<compile_context>
chip_gen: v5e
topology: v5e:2x2
jax: 0.10.0
libtpu: 0.0.40
codegen_flags: <defaults>
</compile_context>

<pallas_src>
from functools import partial

import jax
import jax.numpy as jnp
from jax.experimental import pallas as pl
from jax.experimental.pallas import tpu as pltpu


def _fml_kernel(w_ref, x_ref, o_ref, *, use_mxu):
    """One block of BN samples.

    x/o blocks: (BN, C, HW) in the caller's (possibly reduced) compute dtype.
    w block:    (BN, 1, C) f32 for the MXU path, (BN, C, 1) f32 for tiny C.
    """
    x = x_ref[...]                                    # native dtype, no upcast
    w = w_ref[...]                                    # f32

    if use_mxu:
        # (BN,1,C) @ (BN,C,HW) -> (BN,1,HW) batched matvec on the MXU; bf16 or
        # f32 tiles go in directly, accumulation stays in f32.
        heat = jnp.einsum("bxc,bck->bxk", w.astype(x.dtype), x,
                          preferred_element_type=jnp.float32)
    else:
        # Tiny C: broadcast-multiply + sublane reduce on the otherwise-idle
        # VPU (f32 accumulation; for f32 inputs the astype is a no-op).
        heat = jnp.sum(x.astype(jnp.float32) * w, axis=1, keepdims=True)

    hmin = jnp.min(heat, axis=-1, keepdims=True)      # (BN,1,1)
    hmax = jnp.max(heat, axis=-1, keepdims=True)
    # One divide per sample, then an HW-wide multiply (not HW divides).
    inv = pl.reciprocal(hmax - hmin + 1e-6, approx=False)
    heat_n = (heat - hmin) * inv                      # (BN,1,HW) f32

    # Rescale in the tile's native dtype; single cast at the store.
    o_ref[...] = (x * heat_n.astype(x.dtype)).astype(o_ref.dtype)


def feature_map_location(features_map, pids, classifier_weight, *,
                         compute_dtype=None, block_bytes_target=8 << 20):
    """features_map: (N, C, H, W); pids: (N,) int32;
    classifier_weight: (num_classes, C) = last parameter of the classifier."""
    n, c, h, w = features_map.shape
    hw = h * w

    x = features_map.reshape(n, c, hw)            # contiguous reshape: free
    if compute_dtype is not None:
        # Optional reduced-precision HBM traffic (e.g. bf16). Heat math stays
        # f32 inside the kernel; output is written in the caller's dtype.
        x = x.astype(compute_dtype)
    in_dtype = x.dtype
    out_dtype = features_map.dtype
    elem = jnp.dtype(in_dtype).itemsize

    use_mxu = c >= 16
    sel_w = classifier_weight[pids].astype(jnp.float32)           # (N, C)
    if use_mxu:
        sel_w = sel_w.reshape(n, 1, c)            # lane-dense weight tiles
        w_block = (None, 1, c)                    # bn filled in below
    else:
        # (N, C, 1) keeps the broadcast trivially lowerable for tiny C; the
        # lane padding of the weight buffer is accounted for in the VMEM
        # budget below (it is tiny because this path only runs for C < 16).
        sel_w = sel_w.reshape(n, c, 1)
        w_block = (None, c, 1)

    # Physical VMEM: 64 MiB/TC on v7x, 128 MiB on v5e/v6e.
    try:
        phys_vmem = int(pltpu.get_tpu_info().vmem_capacity_bytes)
    except Exception:  # conservative fallback, safe on every generation
        phys_vmem = 64 << 20

    # Per-sample VMEM footprint: 2 in + 2 out double-buffered blocks + ~1
    # block-sized temporary, plus the (lane/sublane padded) weight buffers.
    per_sample = c * hw * elem
    c_lane = -(-c // 128) * 128
    c_sub = -(-c // 8) * 8
    w_pad_per_sample = (8 * c_lane * 4) if use_mxu else (c_sub * 128 * 4)
    per_sample_foot = 5 * per_sample + 2 * w_pad_per_sample

    # Samples per grid step:
    #  * MiB-scale blocks (amortize ~0.35us/step + DMA ramp),
    #  * stay well inside physical VMEM,
    #  * keep the grid >= 2 steps so both v7x TensorCores get work.
    bn_target = max(1, block_bytes_target // max(per_sample, 1))
    bn_vmem = max(1, int(0.6 * phys_vmem) // max(per_sample_foot, 1))
    bn_cores = max(1, -(-n // 2))
    bn = int(max(1, min(n, bn_target, bn_vmem, bn_cores)))
    num_blocks = pl.cdiv(n, bn)     # ragged last block handled by Pallas

    # TODO(synk): if a single sample (C*HW) overflows the VMEM budget, add an
    # HW-tiled two-pass path (pass 1: per-sample heat min/max; pass 2: rescale).

    vmem_needed = bn * per_sample_foot + (2 << 20)
    vmem_limit = int(min(phys_vmem, max(32 << 20, vmem_needed)))

    kernel = partial(_fml_kernel, use_mxu=use_mxu)
    out = pl.pallas_call(
        kernel,
        out_shape=jax.ShapeDtypeStruct((n, c, hw), out_dtype),
        grid=(num_blocks,),
        in_specs=[
            pl.BlockSpec((bn,) + w_block[1:], lambda i: (i, 0, 0)),
            pl.BlockSpec((bn, c, hw), lambda i: (i, 0, 0)),
        ],
        out_specs=pl.BlockSpec((bn, c, hw), lambda i: (i, 0, 0)),
        compiler_params=pltpu.CompilerParams(
            # Sample axis stays "parallel" -> sharded across v7x's 2 TCs.
            dimension_semantics=("parallel",),
            vmem_limit_bytes=vmem_limit,
        ),
    )(sel_w, x)

    return out.reshape(n, c, h, w)


def _reference(features_map, pids, classifier_weight):
    n, c, h, w = features_map.shape
    sel_w = classifier_weight[pids]                         # (N, C)
    fmap_flat = features_map.reshape(n, c, h * w)           # (N, C, HW)
    heat = jnp.einsum("nc,nck->nk", sel_w, fmap_flat)       # (N, HW)
    hmin = heat.min(axis=1, keepdims=True)
    hmax = heat.max(axis=1, keepdims=True)
    heat = (heat - hmin) / (hmax - hmin + 1e-6)
    return features_map * heat.reshape(n, 1, h, w)


def _run_case(key, n, c, h, w, num_classes, **kwargs):
    k1, k2, k3 = jax.random.split(key, 3)
    features_map = jax.random.normal(k1, (n, c, h, w), dtype=jnp.float32)
    classifier_weight = jax.random.normal(k2, (num_classes, c),
                                          dtype=jnp.float32)
    pids = jax.random.randint(k3, (n,), 0, num_classes, dtype=jnp.int32)

    out = feature_map_location(features_map, pids, classifier_weight, **kwargs)
    out = jax.block_until_ready(out)
    ref = _reference(features_map, pids, classifier_weight)
    assert out.shape == (n, c, h, w)
    assert out.dtype == features_map.dtype
    assert jnp.allclose(out, ref, atol=1e-4, rtol=1e-4), (
        f"mismatch for shape {(n, c, h, w)}: "
        f"max abs err {jnp.max(jnp.abs(out - ref))}")


if __name__ == "__main__":
    key = jax.random.PRNGKey(0)
    k1, k2, k3 = jax.random.split(key, 3)

    # Tiny C -> VPU heat path; bn capped at ceil(n/2)=1 so the grid has 2
    # steps (both v7x TCs busy).
    _run_case(k1, n=2, c=4, h=16, w=16, num_classes=8)
    # HW = 49 (masked stores, no wrapper transpose), MXU heat path; bn=2 over
    # n=3 exercises the ragged last block (no jnp.pad round-up).
    _run_case(k2, n=3, c=128, h=7, w=7, num_classes=8,
              block_bytes_target=64 * 1024)
    # C = 64 -> MXU (batched einsum) heat path, grid of 2 single-sample blocks.
    _run_case(k3, n=2, c=64, h=16, w=16, num_classes=8)

    print("KERNEL_OK")
</pallas_src>

<mosaic_0001>
module attributes {stable_mosaic.version = 11 : i64} {
  func.func @_fml_kernel(%arg0: i32, %arg1: memref<1x4x1xf32, #tpu.memory_space<vmem>>, %arg2: memref<1x4x256xf32, #tpu.memory_space<vmem>>, %arg3: memref<1x4x256xf32, #tpu.memory_space<vmem>>) attributes {dimension_semantics = [#tpu.dimension_semantics<parallel>], iteration_bounds = array<i64: 2>, scalar_prefetch = 0 : i64, scratch_operands = 0 : i64, tpu.core_type = #tpu.core_type<tc>, window_params = [{transform_indices = @transform_0, window_bounds = array<i64: 1, 4, 1>}, {transform_indices = @transform_1, window_bounds = array<i64: 1, 4, 256>}, {transform_indices = @transform_2, window_bounds = array<i64: 1, 4, 256>}]} {
    %c0 = arith.constant 0 : index
    %c0_0 = arith.constant 0 : index
    %c0_1 = arith.constant 0 : index
    %0 = vector.load %arg2[%c0, %c0_0, %c0_1] : memref<1x4x256xf32, #tpu.memory_space<vmem>>, vector<1x4x256xf32>
    %c0_2 = arith.constant 0 : index
    %c0_3 = arith.constant 0 : index
    %c0_4 = arith.constant 0 : index
    %1 = vector.load %arg1[%c0_2, %c0_3, %c0_4] : memref<1x4x1xf32, #tpu.memory_space<vmem>>, vector<1x4x1xf32>
    %2 = vector.broadcast %1 : vector<1x4x1xf32> to vector<1x4x256xf32>
    %3 = arith.mulf %0, %2 : vector<1x4x256xf32>
    %cst = arith.constant dense<0.000000e+00> : vector<1x256xf32>
    %4 = vector.multi_reduction <add>, %3, %cst [1] : vector<1x4x256xf32> to vector<1x256xf32>
    %5 = vector.shape_cast %4 : vector<1x256xf32> to vector<1x1x256xf32>
    %cst_5 = arith.constant dense<0x7F800000> : vector<1x1xf32>
    %6 = vector.multi_reduction <minimumf>, %5, %cst_5 [2] : vector<1x1x256xf32> to vector<1x1xf32>
    %7 = vector.shape_cast %6 : vector<1x1xf32> to vector<1x1x1xf32>
    %cst_6 = arith.constant dense<0xFF800000> : vector<1x1xf32>
    %8 = vector.multi_reduction <maximumf>, %5, %cst_6 [2] : vector<1x1x256xf32> to vector<1x1xf32>
    %9 = vector.shape_cast %8 : vector<1x1xf32> to vector<1x1x1xf32>
    %10 = arith.subf %9, %7 : vector<1x1x1xf32>
    %cst_7 = arith.constant 9.99999997E-7 : f32
    %11 = vector.broadcast %cst_7 : f32 to vector<1x1x1xf32>
    %12 = arith.addf %10, %11 : vector<1x1x1xf32>
    %13 = tpu.reciprocal %12 : vector<1x1x1xf32> -> vector<1x1x1xf32>
    %14 = vector.broadcast %7 : vector<1x1x1xf32> to vector<1x1x256xf32>
    %15 = arith.subf %5, %14 : vector<1x1x256xf32>
    %16 = vector.broadcast %13 : vector<1x1x1xf32> to vector<1x1x256xf32>
    %17 = arith.mulf %15, %16 : vector<1x1x256xf32>
    %18 = vector.broadcast %17 : vector<1x1x256xf32> to vector<1x4x256xf32>
    %19 = arith.mulf %0, %18 : vector<1x4x256xf32>
    %c0_8 = arith.constant 0 : index
    %c0_9 = arith.constant 0 : index
    %c0_10 = arith.constant 0 : index
    %20 = vector.load %arg3[%c0_8, %c0_9, %c0_10] : memref<1x4x256xf32, #tpu.memory_space<vmem>>, vector<1x4x256xf32>
    tpu.vector_store %arg3[%c0_8, %c0_9, %c0_10], %19 {strides = array<i32>} : memref<1x4x256xf32, #tpu.memory_space<vmem>>, vector<1x4x256xf32>,
    return
  }
  func.func @transform_0(%arg0: i32) -> (i32, i32, i32) {
    %c0_i32 = arith.constant 0 : i32
    %c0_i32_0 = arith.constant 0 : i32
    %c0_i32_1 = arith.constant 0 : i32
    return %arg0, %c0_i32, %c0_i32_0 : i32, i32, i32
  }
  func.func @transform_1(%arg0: i32) -> (i32, i32, i32) {
    %c0_i32 = arith.constant 0 : i32
    %c0_i32_0 = arith.constant 0 : i32
    %c0_i32_1 = arith.constant 0 : i32
    return %arg0, %c0_i32, %c0_i32_0 : i32, i32, i32
  }
  func.func @transform_2(%arg0: i32) -> (i32, i32, i32) {
    %c0_i32 = arith.constant 0 : i32
    %c0_i32_0 = arith.constant 0 : i32
    %c0_i32_1 = arith.constant 0 : i32
    return %arg0, %c0_i32, %c0_i32_0 : i32, i32, i32
  }
}

</mosaic_0001>

<llo_original>
// kernel: tpu_custom_call.1
$region0: #{tpu_custom_call.1}
  #allocation0 [shape = 'u32[]', space=smem, size = 0x4, offset = 0x4, fixed_abs, tag = 'smem constant byte address 0x4 - core index']
  #allocation1 [shape = 'u32[72,128]{1,0:T(1,128)}', space=vmem, size = 0x9000, scoped, tag = 'internal scratch']
  %s0 = inlined_call_operand.vmem [shape: f32[2,4,1], index: 0, kind: input, shape index: {}]
  %s1 = inlined_call_operand.hbm [shape: f32[2,4,256], index: 1, kind: input, shape index: {}]
  %s2 = inlined_call_operand.hbm [shape: f32[2,4,256], index: 2, kind: output, shape index: {}]
  %s3 = sld [smem:[#allocation0]]
  $region45: #{tpu_custom_call.1} parent=0
    _
  %s5 = ssub.s32 1, %s3
  %s6 = scalar_select 0, %s5, %s3
  $region1: #{tpu_custom_call.1} parent=0
    #allocation2 [shape = 'u8[8192]{0}', space=vmem, size = 0x2000, scoped, tag = 'input window, operand 1']
    #allocation3 [shape = 's32[2]{0}', space=sflag, size = 0x8, scoped, tag = 'scoped memory for tpu_custom_call.1']
    #allocation4 [shape = 's32[2]{0}', space=sflag, size = 0x8, scoped, tag = 'scoped memory for tpu_custom_call.1']
    #allocation5 [shape = 'u8[8192]{0}', space=vmem, size = 0x2000, scoped, tag = 'output window, operand 0']
    %7 = vsyncpa [#allocation3], 0
    %s8 = scalar_lea.sflag [#allocation3], 1
    %9 = vsyncpa %s8, 0
    %10 = vsyncpa [#allocation4], 0
    %s11 = scalar_lea.sflag [#allocation4], 1
    %12 = vsyncpa %s11, 0
    loop: start=0, step=1, limit=4
    $region2: #{tpu_custom_call.1} parent=1 // loop_pre_header
      _
    $region3: #{tpu_custom_call.1} parent=1 // loop_header
      %s14 = sphi 0, %s18
      %p15 = scmp.ge.s32.totalorder %s14, 4
      %s24 = sphi 0, %s26
      %s27 = sphi 0, %s24
      %s28 = sphi 0, %s27
      %s44 = sphi 0, %s28
      %s50 = sphi 0, %s52
      %s53 = sphi 0, %s50
      %s54 = sphi 0, %s53
      %s70 = sphi 0, %s54
      %s76 = sphi 0, %s78
      %s79 = sphi 0, %s76
      %s80 = sphi 0, %s79
      %s96 = sphi 0, %s80
    $region4: #{tpu_custom_call.1} parent=1 // loop_header_branch
      %17 = sbr.rel (%p15) target = $region8
    $region5: #{tpu_custom_call.1} parent=1 // loop_body
      %s19 = ssub.s32 %s14, 1
      %s20 = ssub.s32 %s14, 2
      %s21 = sadd.s32 %s14, 1
      %s22 = ssub.s32 %s14, %s21
      %p23 = scmp.eq.s32.totalorder %s22, 0
      %s25 = sadd.s32 %s24, 1
      %s26 = scalar_select %p23, %s24, %s25
      %p29 = pneg %p23
      %p30 = scmp.eq.s32.totalorder %s14, 1
      %p31 = por %p29, %p30
      %p32 = scmp.ne.s32.totalorder %s24, %s27
      %p33 = scmp.eq.s32.totalorder %s14, 0
      %p34 = por %p32, %p33
      %p35 = scmp.ne.s32.totalorder %s24, %s27
      %p36 = scmp.eq.s32.totalorder %s19, 1
      %p37 = por %p35, %p36
      %p38 = scmp.ne.s32.totalorder %s27, %s28
      %p39 = scmp.eq.s32.totalorder %s19, 0
      %p40 = por %p38, %p39
      %p41 = scmp.ne.s32.totalorder %s27, %s28
      %p42 = scmp.eq.s32.totalorder %s20, 1
      %p43 = por %p41, %p42
      %p45 = scmp.ne.s32.totalorder %s28, %s44
      %p46 = scmp.eq.s32.totalorder %s20, 0
      %p47 = por %p45, %p46
      %s48 = ssub.s32 %s14, %s21
      %p49 = scmp.eq.s32.totalorder %s48, 0
      %s51 = sadd.s32 %s50, 1
      %s52 = scalar_select %p49, %s50, %s51
      %p55 = pneg %p49
      %p56 = scmp.eq.s32.totalorder %s14, 1
      %p57 = por %p55, %p56
      %p58 = scmp.ne.s32.totalorder %s50, %s53
      %p59 = scmp.eq.s32.totalorder %s14, 0
      %p60 = por %p58, %p59
      %p61 = scmp.ne.s32.totalorder %s50, %s53
      %p62 = scmp.eq.s32.totalorder %s19, 1
      %p63 = por %p61, %p62
      %p64 = scmp.ne.s32.totalorder %s53, %s54
      %p65 = scmp.eq.s32.totalorder %s19, 0
      %p66 = por %p64, %p65
      %p67 = scmp.ne.s32.totalorder %s53, %s54
      %p68 = scmp.eq.s32.totalorder %s20, 1
      %p69 = por %p67, %p68
      %p71 = scmp.ne.s32.totalorder %s54, %s70
      %p72 = scmp.eq.s32.totalorder %s20, 0
      %p73 = por %p71, %p72
      %s74 = ssub.s32 %s14, %s21
      %p75 = scmp.eq.s32.totalorder %s74, 0
      %s77 = sadd.s32 %s76, 1
      %s78 = scalar_select %p75, %s76, %s77
      %p81 = pneg %p75
      %p82 = scmp.eq.s32.totalorder %s14, 1
      %p83 = por %p81, %p82
      %p84 = scmp.ne.s32.totalorder %s76, %s79
      %p85 = scmp.eq.s32.totalorder %s14, 0
      %p86 = por %p84, %p85
      %p87 = scmp.ne.s32.totalorder %s76, %s79
      %p88 = scmp.eq.s32.totalorder %s19, 1
      %p89 = por %p87, %p88
      %p90 = scmp.ne.s32.totalorder %s79, %s80
      %p91 = scmp.eq.s32.totalorder %s19, 0
      %p92 = por %p90, %p91
      %p93 = scmp.ne.s32.totalorder %s79, %s80
      %p94 = scmp.eq.s32.totalorder %s20, 1
      %p95 = por %p93, %p94
      %p97 = scmp.ne.s32.totalorder %s80, %s96
      %p98 = scmp.eq.s32.totalorder %s20, 0
      %p99 = por %p97, %p98
      %p100 = scmp.le.s32.totalorder 1, %s14
      %p101 = scmp.lt.s32.totalorder %s14, 3
      %p102 = pnand %p100, %p101
      %p103 = pneg %p102
      // Predicated region
      $region9: #{tpu_custom_call.1} parent=5 // pred_check
        _
      $region10: #{tpu_custom_call.1} parent=5 // pred_check_branch
        %105 = sbr.rel (%p102) target = $region12
      $region11: #{tpu_custom_call.1} parent=5 // pred_region
        %s106 = ssub.s32 %s14, 1
      $region12: #{tpu_custom_call.1} parent=5 // pred_fallthru
        _
      %p107 = scmp.lt.s32.totalorder %s14, 2
      // Predicated region
      $region13: #{tpu_custom_call.1} parent=5 // pred_check
        %p108 = pneg %p107
      $region14: #{tpu_custom_call.1} parent=5 // pred_check_branch
        %110 = sbr.rel (%p108) target = $region16
      $region15: #{tpu_custom_call.1} parent=5 // pred_region
        // Predicated region
        $region17: #{tpu_custom_call.1} parent=15 // pred_check
          %p111 = pneg %p34
        $region18: #{tpu_custom_call.1} parent=15 // pred_check_branch
          %113 = sbr.rel (%p111) target = $region20
        $region19: #{tpu_custom_call.1} parent=15 // pred_region
          %p114 = scmp.lt.s32.totalorder %s14, 1
          %s115 = scalar_select %p114, %s14, 1
          %s116 = smul.addr %s115, 4
          %s117 = scalar_lea.vmem %s0, %s116
        $region20: #{tpu_custom_call.1} parent=15 // pred_fallthru
          _
        // Predicated region
        $region21: #{tpu_custom_call.1} parent=15 // pred_check
          %p118 = pneg %p60
        $region22: #{tpu_custom_call.1} parent=15 // pred_check_branch
          %120 = sbr.rel (%p118) target = $region24
        $region23: #{tpu_custom_call.1} parent=15 // pred_region
          %s121 = sand.u32 %s50, 1
          %s122 = scalar_lea.sflag [#allocation3], %s121
          %s123 = sand.u32 %s50, 1
          %s124 = smul.addr %s123, 8
          %s125 = scalar_lea.vmem [#allocation2], %s124
          %127 = vsyncadd %s122, 0
          %s128 = smul.addr %s14, 2
          %s129 = smul.addr %s128, 4
          %s130 = scalar_lea.hbm %s1, %s129
          %s132 = sshll.u32 %s130, 4
          %s133 = int_to_ptr.hbm [resolvable:$true] %s132
          %s134 = sshll.u32 %s125, 4
          %s135 = int_to_ptr.vmem [resolvable:$true] %s134
          %137 = dma.hbm_to_vmem [thread:$0]  %s133, 128, %s135, %s122
        $region24: #{tpu_custom_call.1} parent=15 // pred_fallthru
          _
      $region16: #{tpu_custom_call.1} parent=5 // pred_fallthru
        _
      %p138 = scmp.le.s32.totalorder 1, %s14
      %p139 = scmp.lt.s32.totalorder %s14, 3
      %p140 = pnand %p138, %p139
      %p141 = pneg %p140
      // Predicated region
      $region25: #{tpu_custom_call.1} parent=5 // pred_check
        _
      $region26: #{tpu_custom_call.1} parent=5 // pred_check_branch
        %143 = sbr.rel (%p140) target = $region28
      $region27: #{tpu_custom_call.1} parent=5 // pred_region
        %s144 = ssub.s32 %s14, 1
        %s145 = sand.u32 %s53, 1
        %s146 = scalar_lea.sflag [#allocation3], %s145
        %s147 = sand.u32 %s53, 1
        %s148 = smul.addr %s147, 8
        %s149 = scalar_lea.vmem [#allocation2], %s148
        // Predicated region
        $region29: #{tpu_custom_call.1} parent=27 // pred_check
          %p150 = pneg %p66
        $region30: #{tpu_custom_call.1} parent=27 // pred_check_branch
          %152 = sbr.rel (%p150) target = $region32
        $region31: #{tpu_custom_call.1} parent=27 // pred_region
          %154 = dma.done %s146, 128
        $region32: #{tpu_custom_call.1} parent=27 // pred_fallthru
          _
        %p155 = scmp.lt.s32.totalorder %s19, 1
        %s156 = scalar_select %p155, %s19, 1
        %s157 = smul.addr %s156, 4
        %s158 = scalar_lea.vmem %s0, %s157
        %p159 = pneg %p40
        %p160 = pneg %p37
        %s161 = sand.u32 %s53, 1
        %s162 = scalar_lea.sflag [#allocation3], %s161
        %s163 = sand.u32 %s53, 1
        %s164 = smul.addr %s163, 8
        %s165 = scalar_lea.vmem [#allocation2], %s164
        %p166 = pneg %p66
        %p167 = pneg %p63
        %p168 = pneg %p92
        %p169 = pneg %p89
        %s170 = sand.u32 %s79, 1
        %s171 = scalar_lea.sflag [#allocation4], %s170
        %s172 = sand.u32 %s79, 1
        %s173 = smul.addr %s172, 8
        %s174 = scalar_lea.vmem [#allocation5], %s173
        %p175 = scmp.lt.s32.totalorder %s19, 1
        %s176 = scalar_select %p175, %s19, 1
        %s177 = smul.addr %s176, 4
        %s178 = scalar_lea.vmem %s0, %s177
        %v179 = vld [vmem:[%s149] sm:$0xff]
        %v180 = vld [vmem:[%s178] sm:$0xf]
        %182 = vset.pattern.permute.xlu0 0
        %183 = vperm.xlu0 %182, %v180
        %v184 = vpop.permute.xlu0 %183
        %v186 = vunpack.c.l.s4 839922192
        %v187 = vunpack.c.0.s8 %v186
        %v188 = vperm.slane %v184, %v187
        %v190 = vmul.f32 %v179, %v188
        %192 = vst [vmem:[#allocation1] ss:$2 sm:$0xff] %v190
        %v193 = vld.sshfl [vmem:[#allocation1] sm:$0xff pattern:$0x75316420]
        %v194 = vld.sshfl [vmem:[#allocation1 + $0x8] sm:$0xff pattern:$0x75316420]
        %vm197 = vcmask 1043456
        %v198 = vsel %vm197, %v193, 0.0
        %v199 = vrot.slane %v198, 4
        %v200 = vadd.f32 %v198, %v199
        %v201 = vrot.slane %v200, 2
        %v202 = vadd.f32 %v200, %v201
        %v203 = vrot.slane %v202, 1
        %v204 = vadd.f32 %v202, %v203
        %v205 = vsel %vm197, %v194, 0.0
        %v206 = vrot.slane %v205, 4
        %v207 = vadd.f32 %v205, %v206
        %v208 = vrot.slane %v207, 2
        %v209 = vadd.f32 %v207, %v208
        %v210 = vrot.slane %v209, 1
        %v211 = vadd.f32 %v209, %v210
        %v212 = vmin.f32 %v204, %v211
        %213 = vmin.xlane.f32.xlu0 %v212
        %v214 = vpop.xlane.xlu0 %213
        %v215 = vmax.f32 %v204, %v211
        %216 = vmax.xlane.f32.xlu0 %v215
        %v217 = vpop.xlane.xlu0 %216
        %v218 = vsub.f32 %v217, %v214
        %v219 = vadd.f32 %v218, 1e-06
        %v220 = vrcp.pop %v219
        %v221 = vmul.f32 %v219, %v220
        %v222 = vsub.f32 1.0, %v221
        %v223 = vmul.f32 %v220, %v222
        %v224 = vadd.f32 %v220, %v223
        %vm225 = vweird.f32 %v219
        %vm226 = vweird.f32 %v220
        %vm227 = vmor %vm225, %vm226
        %v228 = vsel %vm227, %v220, %v224
        %v229 = vand.u32 2147483647, %v219
        %vm230 = vcmp.eq.f32.partialorder %v229, 8.507059e+37
        %v231 = vand.u32 %v219, 2147483648
        %v232 = vor.u32 1.1754944e-38, %v231
        %v233 = vsel %vm230, %v232, %v228
        %v234 = vsub.f32 %v204, %v214
        %v235 = vsub.f32 %v211, %v214
        %v236 = vmul.f32 %v234, %v233
        %v237 = vmul.f32 %v235, %v233
        %v240 = vrot.slane %v237, 4
        %v241 = vsel %vm197, %v236, %v240
        %v243 = vmul.f32 %v179, %v241
        %244 = vst [vmem:[%s174] sm:$0xff] %v243
        %s245 = sand.u32 %s79, 1
        %s246 = scalar_lea.sflag [#allocation4], %s245
        %s247 = sand.u32 %s79, 1
        %s248 = smul.addr %s247, 8
        %s249 = scalar_lea.vmem [#allocation5], %s248
        // Predicated region
        $region33: #{tpu_custom_call.1} parent=27 // pred_check
          %p250 = pneg %p89
        $region34: #{tpu_custom_call.1} parent=27 // pred_check_branch
          %252 = sbr.rel (%p250) target = $region36
        $region35: #{tpu_custom_call.1} parent=27 // pred_region
          %254 = vsyncadd %s246, 0
          %s255 = smul.addr %s19, 2
          %s256 = smul.addr %s255, 4
          %s257 = scalar_lea.hbm %s2, %s256
          %s259 = sshll.u32 %s249, 4
          %s260 = int_to_ptr.vmem [resolvable:$true] %s259
          %s261 = sshll.u32 %s257, 4
          %s262 = int_to_ptr.hbm [resolvable:$true] %s261
          %264 = dma.vmem_to_hbm [thread:$0]  %s260, 128, %s262, %s246
        $region36: #{tpu_custom_call.1} parent=27 // pred_fallthru
          _
      $region28: #{tpu_custom_call.1} parent=5 // pred_fallthru
        _
      %p265 = scmp.le.s32.totalorder 2, %s14
      // Predicated region
      $region37: #{tpu_custom_call.1} parent=5 // pred_check
        %p266 = pneg %p265
      $region38: #{tpu_custom_call.1} parent=5 // pred_check_branch
        %268 = sbr.rel (%p266) target = $region40
      $region39: #{tpu_custom_call.1} parent=5 // pred_region
        %s269 = ssub.s32 %s14, 2
        // Predicated region
        $region41: #{tpu_custom_call.1} parent=39 // pred_check
          %p270 = pneg %p95
        $region42: #{tpu_custom_call.1} parent=39 // pred_check_branch
          %272 = sbr.rel (%p270) target = $region44
        $region43: #{tpu_custom_call.1} parent=39 // pred_region
          %s273 = sand.u32 %s80, 1
          %s274 = scalar_lea.sflag [#allocation4], %s273
          %s275 = sand.u32 %s80, 1
          %s276 = smul.addr %s275, 8
          %s277 = scalar_lea.vmem [#allocation5], %s276
          %279 = dma.done %s274, 128
        $region44: #{tpu_custom_call.1} parent=39 // pred_fallthru
          _
      $region40: #{tpu_custom_call.1} parent=5 // pred_fallthru
        _
    $region6: #{tpu_custom_call.1} parent=1 // loop_footer
      %s18 = sadd.s32 1, %s14
    $region7: #{tpu_custom_call.1} parent=1 // loop_footer_branch
      %13 = sbr.rel target = $region3
    $region8: #{tpu_custom_call.1} parent=1 // loop_exit
      _
    %280 = vsyncpa [#allocation3], 1
    %s281 = scalar_lea.sflag [#allocation3], 1
    %282 = vsyncpa %s281, 1
    %283 = vsyncpa [#allocation4], 1
    %s284 = scalar_lea.sflag [#allocation4], 1
    %285 = vsyncpa %s284, 1

</llo_original>
